<compile_context>
chip_gen: v7x
topology: tpu7x:2x2x1
jax: 0.10.0
libtpu: 0.0.40
codegen_flags: <defaults>
</compile_context>

<pallas_src>
import functools

import jax
import jax.numpy as jnp
from jax.experimental import pallas as pl
from jax.experimental.pallas import tpu as pltpu

N_FEATURE = 5
N_HIDDEN = 64
N_OUTPUT = 2
N_IN = N_FEATURE + 1          # 6 constructed features
N_HID_AUG = 2 * N_HIDDEN      # 128 (both branches side by side)
IN_LANES = 8                  # input padded to 8 lanes (32-byte aligned rows)
OUT_LANES = 8                 # compact output slab (was 128)
N_RED = 8                     # layer-3 reduction-vector rows (sublane aligned)


def _round_up(x, m):
    return ((x + m - 1) // m) * m


def net_v4_kernel(x_ref, w1_ref, w2_ref, w3r_ref, o_ref, *, mxu_dtype):
    x = x_ref[...]            # (TB, 8)  f32; lanes 5..7 are zero padding
    w1 = w1_ref[...]          # (6, 128)  f32, sign-augmented first layer
    w2 = w2_ref[...]          # (128, 128) block_diag(w2, w2), mxu_dtype
    w3r = w3r_ref[...]        # (8, 128)  f32, layer-3 reduction vectors

    v_sqrt = jnp.sqrt(x[:, 0:1])
    beta = x[:, 1:2]
    feats = (v_sqrt, jnp.cos(beta), jnp.sin(beta),
             x[:, 2:3], x[:, 3:4], x[:, 4:5])

    # Layer 1: 6 rank-1 broadcast FMAs on the VPU.  Branch symmetry is folded
    # into w1 (second half of its columns has rows 2,3 negated), so one
    # 6-feature vector drives both branches at once.
    # (Alternative: lane-dense (TB, 8) feature block + tiny-K MXU matmul;
    #  keep the FMA path unless bundle counts show VALU/XLU is binding.)
    h = feats[0] * w1[0:1, :]
    for k in range(1, N_IN):
        h = h + feats[k] * w1[k:k + 1, :]
    h = jnp.tanh(h)                                               # (TB,128) f32

    # Layer 2: one full-width MXU matmul for both fused branches.  Operands
    # optionally bf16 (tanh output is bounded in [-1,1]); f32 accumulation.
    h2 = jnp.dot(h.astype(mxu_dtype), w2,
                 preferred_element_type=jnp.float32)
    h2 = jnp.tanh(h2)                                             # (TB,128) f32

    # Layer 3 OFF the MXU: VPU multiplies + XLU lane reductions.
    #   w3r row 0 = [w3[:,0] | 0       ]        -> vd1
    #   w3r row 1 = [0       | w3[:,0] ]        -> vd2
    #   w3r row 2 = 0.5*[w3[:,1] | -w3[:,1]]    -> out1 = 0.5*(bd1 - bd2)
    vd1 = jnp.sum(h2 * w3r[0:1, :], axis=-1, keepdims=True)
    vd2 = jnp.sum(h2 * w3r[1:2, :], axis=-1, keepdims=True)
    out1 = jnp.sum(h2 * w3r[2:3, :], axis=-1, keepdims=True)

    # (vd1*(2v+vd1) + vd2*(2v+vd2))/2 == 0.5*(vd1^2 + vd2^2) + v*(vd1+vd2)
    out0 = 0.5 * (vd1 * vd1 + vd2 * vd2) + v_sqrt * (vd1 + vd2)

    tb = x.shape[0]
    pad = jnp.zeros((tb, OUT_LANES - N_OUTPUT), jnp.float32)
    o_ref[...] = jnp.concatenate([out0, out1, pad], axis=-1)      # (TB, 8)


def _augment_weights(w1, w2, w3, mxu_dtype):
    """Fuse the two symmetric branches into block-augmented weights."""
    # Branch 2 feeds x1 * [1, 1, -1, -1, 1, 1] into hidden1.
    sign = jnp.array([1.0, 1.0, -1.0, -1.0, 1.0, 1.0], jnp.float32)[:, None]
    w1_aug = jnp.concatenate([w1, sign * w1], axis=1)             # (6, 128) f32

    zh = jnp.zeros_like(w2)
    w2_aug = jnp.concatenate(
        [jnp.concatenate([w2, zh], axis=1),
         jnp.concatenate([zh, w2], axis=1)], axis=0).astype(mxu_dtype)  # (128,128)

    # Layer-3 reduction vectors (kept f32; layer 3 runs on the VPU/XLU).
    zeros_h = jnp.zeros((N_HIDDEN,), jnp.float32)
    vd_vec1 = jnp.concatenate([w3[:, 0], zeros_h])                # (128,)
    vd_vec2 = jnp.concatenate([zeros_h, w3[:, 0]])                # (128,)
    bd_vec = 0.5 * jnp.concatenate([w3[:, 1], -w3[:, 1]])         # (128,)
    w3_red = jnp.zeros((N_RED, N_HID_AUG), jnp.float32)
    w3_red = w3_red.at[0].set(vd_vec1).at[1].set(vd_vec2).at[2].set(bd_vec)
    return w1_aug, w2_aug, w3_red


def net_v4_forward(x, w1, w2, w3, *, tile_b=2048, mxu_dtype=jnp.bfloat16):
    B = x.shape[0]
    w1_aug, w2_aug, w3_red = _augment_weights(w1, w2, w3, mxu_dtype)

    # Batch tile: biggest requested tile still >= padded batch, sublane-aligned.
    tb = min(tile_b, _round_up(B, 8))
    tb = _round_up(tb, 8)
    b_pad = _round_up(B, tb)

    # Pad rows (zero rows are safe: sqrt(0)=0, cos(0)=1; sliced off below) and
    # lanes 5..7 so HBM input rows are 32-byte aligned for the DMA.
    x = jnp.pad(x, ((0, b_pad - B), (0, IN_LANES - N_FEATURE)))

    grid = (pl.cdiv(b_pad, tb),)

    # Per-row cost: ~35 KFLOP (layer1 FMAs + 128x128 matmul + layer3 VPU/XLU),
    # ~259 transcendentals, 32 B in + 32 B out, plus resident weights once.
    weight_bytes = (w1_aug.size * 4
                    + w2_aug.size * w2_aug.dtype.itemsize
                    + w3_red.size * 4)
    cost = pl.CostEstimate(
        flops=36_000 * b_pad,
        transcendentals=260 * b_pad,
        bytes_accessed=(IN_LANES + OUT_LANES) * 4 * b_pad + weight_bytes,
    )

    kernel = functools.partial(net_v4_kernel, mxu_dtype=mxu_dtype)

    out = pl.pallas_call(
        kernel,
        out_shape=jax.ShapeDtypeStruct((b_pad, OUT_LANES), jnp.float32),
        grid_spec=pltpu.PrefetchScalarGridSpec(
            num_scalar_prefetch=0,
            grid=grid,
            in_specs=[
                pl.BlockSpec((tb, IN_LANES), lambda i: (i, 0)),
                # Weights: constant index_map -> fetched once, resident in VMEM.
                pl.BlockSpec((N_IN, N_HID_AUG), lambda i: (0, 0)),
                pl.BlockSpec((N_HID_AUG, N_HID_AUG), lambda i: (0, 0)),
                pl.BlockSpec((N_RED, N_HID_AUG), lambda i: (0, 0)),
            ],
            out_specs=pl.BlockSpec((tb, OUT_LANES), lambda i: (i, 0)),
        ),
        compiler_params=pltpu.CompilerParams(
            # On v7x, consider pltpu.CORE_PARALLEL here if the trace shows a
            # single busy TensorCore.
            dimension_semantics=("parallel",),
            vmem_limit_bytes=32 * 1024 * 1024,
        ),
        cost_estimate=cost,
    )(x, w1_aug, w2_aug, w3_red)

    # Tiny slice (32 B/row) instead of the previous 512 B/row padded slab.
    return out[:B, :N_OUTPUT]


def init_params(key):
    # Deterministic init mimicking nn.Linear (uniform +/- 1/sqrt(fan_in)),
    # stored transposed as (in, out) for x @ W.
    k1, k2, k3 = jax.random.split(key, 3)

    def lin(k, fan_in, fan_out):
        bound = 1.0 / jnp.sqrt(jnp.float32(fan_in))
        return jax.random.uniform(
            k, (fan_in, fan_out), jnp.float32, minval=-bound, maxval=bound)

    w1 = lin(k1, N_IN, N_HIDDEN)        # hidden1: 6 -> 64
    w2 = lin(k2, N_HIDDEN, N_HIDDEN)    # hidden2: 64 -> 64
    w3 = lin(k3, N_HIDDEN, N_OUTPUT)    # predict: 64 -> 2
    return w1, w2, w3


def reference_forward(x, w1, w2, w3):
    # Pure-JAX reference matching the PyTorch module exactly (f32 throughout).
    v_sqrt = jnp.sqrt(x[:, 0:1])
    beta = x[:, 1:2]
    steering = x[:, 2:3]
    tb = x[:, 3:5]
    x1 = jnp.concatenate(
        [v_sqrt, jnp.cos(beta), jnp.sin(beta), steering, tb], axis=-1)
    x2 = jnp.concatenate(
        [v_sqrt, jnp.cos(beta), -jnp.sin(beta), -steering, tb], axis=-1)

    def mlp(a):
        h = jnp.tanh(a @ w1)
        h = jnp.tanh(h @ w2)
        return h @ w3

    y1 = mlp(x1)
    y2 = mlp(x2)
    vd1, bd1 = y1[:, 0:1], y1[:, 1:2]
    vd2, bd2 = y2[:, 0:1], y2[:, 1:2]
    out0 = vd1 * (2 * v_sqrt + vd1) + vd2 * (2 * v_sqrt + vd2)
    out1 = bd1 - bd2
    return jnp.concatenate([out0, out1], axis=-1) / 2.0


def _make_inputs(key, batch):
    k_v, k_r = jax.random.split(key)
    raw = jax.random.uniform(k_r, (batch, N_FEATURE), jnp.float32,
                             minval=-1.0, maxval=1.0)
    # Column 0 is velocity (must be non-negative for sqrt).
    v_col = jax.random.uniform(k_v, (batch, 1), jnp.float32,
                               minval=0.0, maxval=4.0)
    return jnp.concatenate([v_col, raw[:, 1:]], axis=-1)


if __name__ == "__main__":
    key = jax.random.PRNGKey(0)
    k_x, k_x2, k_p = jax.random.split(key, 3)

    w1, w2, w3 = init_params(k_p)

    # Small primary check (B = 8, single tile).
    x_small = _make_inputs(k_x, 8)
    ref_small = reference_forward(x_small, w1, w2, w3)

    # Exact-numerics path (f32 MXU operands) -> tight tolerance.
    out_f32 = jax.block_until_ready(
        net_v4_forward(x_small, w1, w2, w3, mxu_dtype=jnp.float32))
    assert out_f32.shape == (8, N_OUTPUT)
    assert jnp.allclose(out_f32, ref_small, atol=2e-5, rtol=1e-4), (
        out_f32, ref_small)

    # Default perf path (bf16 MXU operands, f32 accumulation) -> relaxed tol.
    out_bf16 = jax.block_until_ready(net_v4_forward(x_small, w1, w2, w3))
    assert out_bf16.shape == (8, N_OUTPUT)
    assert jnp.allclose(out_bf16, ref_small, atol=3e-2, rtol=3e-2), (
        out_bf16, ref_small)

    # Secondary check exercising grid > 1 and the padded-tail path
    # (B = 100 with tile_b = 32 -> padded to 128, 4 grid steps).
    x_big = _make_inputs(k_x2, 100)
    ref_big = reference_forward(x_big, w1, w2, w3)
    out_big = jax.block_until_ready(
        net_v4_forward(x_big, w1, w2, w3, tile_b=32, mxu_dtype=jnp.float32))
    assert out_big.shape == (100, N_OUTPUT)
    assert jnp.allclose(out_big, ref_big, atol=2e-5, rtol=1e-4), (
        out_big, ref_big)

    print("KERNEL_OK")
</pallas_src>

<mosaic_0001>
module attributes {stable_mosaic.version = 11 : i64} {
  func.func @net_v4_kernel(%arg0: i32, %arg1: memref<8x8xf32, #tpu.memory_space<vmem>>, %arg2: memref<6x128xf32, #tpu.memory_space<vmem>>, %arg3: memref<128x128xf32, #tpu.memory_space<vmem>>, %arg4: memref<8x128xf32, #tpu.memory_space<vmem>>, %arg5: memref<8x8xf32, #tpu.memory_space<vmem>>) attributes {dimension_semantics = [#tpu.dimension_semantics<parallel>], iteration_bounds = array<i64: 1>, scalar_prefetch = 0 : i64, scratch_operands = 0 : i64, tpu.core_type = #tpu.core_type<tc>, window_params = [{transform_indices = @transform_0, window_bounds = array<i64: 8, 8>}, {pipeline_mode = #tpu.pipeline_mode<synchronous>, transform_indices = @transform_1, window_bounds = array<i64: 6, 128>}, {pipeline_mode = #tpu.pipeline_mode<synchronous>, transform_indices = @transform_2, window_bounds = array<i64: 128, 128>}, {pipeline_mode = #tpu.pipeline_mode<synchronous>, transform_indices = @transform_3, window_bounds = array<i64: 8, 128>}, {transform_indices = @transform_4, window_bounds = array<i64: 8, 8>}]} {
    %c0 = arith.constant 0 : index
    %c0_0 = arith.constant 0 : index
    %0 = vector.load %arg1[%c0, %c0_0] : memref<8x8xf32, #tpu.memory_space<vmem>>, vector<8x8xf32>
    %c0_1 = arith.constant 0 : index
    %c0_2 = arith.constant 0 : index
    %1 = vector.load %arg2[%c0_1, %c0_2] : memref<6x128xf32, #tpu.memory_space<vmem>>, vector<6x128xf32>
    %c0_3 = arith.constant 0 : index
    %c0_4 = arith.constant 0 : index
    %2 = vector.load %arg3[%c0_3, %c0_4] : memref<128x128xf32, #tpu.memory_space<vmem>>, vector<128x128xf32>
    %c0_5 = arith.constant 0 : index
    %c0_6 = arith.constant 0 : index
    %3 = vector.load %arg4[%c0_5, %c0_6] : memref<8x128xf32, #tpu.memory_space<vmem>>, vector<8x128xf32>
    %4 = vector.extract_strided_slice %0 {offsets = [0, 0], sizes = [8, 1], strides = [1, 1]} : vector<8x8xf32> to vector<8x1xf32>
    %5 = math.sqrt %4 : vector<8x1xf32>
    %6 = vector.extract_strided_slice %0 {offsets = [0, 1], sizes = [8, 1], strides = [1, 1]} : vector<8x8xf32> to vector<8x1xf32>
    %7 = math.cos %6 : vector<8x1xf32>
    %8 = math.sin %6 : vector<8x1xf32>
    %9 = vector.extract_strided_slice %0 {offsets = [0, 2], sizes = [8, 1], strides = [1, 1]} : vector<8x8xf32> to vector<8x1xf32>
    %10 = vector.extract_strided_slice %0 {offsets = [0, 3], sizes = [8, 1], strides = [1, 1]} : vector<8x8xf32> to vector<8x1xf32>
    %11 = vector.extract_strided_slice %0 {offsets = [0, 4], sizes = [8, 1], strides = [1, 1]} : vector<8x8xf32> to vector<8x1xf32>
    %12 = vector.extract_strided_slice %1 {offsets = [0, 0], sizes = [1, 128], strides = [1, 1]} : vector<6x128xf32> to vector<1x128xf32>
    %13 = vector.broadcast %5 : vector<8x1xf32> to vector<8x128xf32>
    %14 = vector.broadcast %12 : vector<1x128xf32> to vector<8x128xf32>
    %15 = arith.mulf %13, %14 : vector<8x128xf32>
    %16 = vector.extract_strided_slice %1 {offsets = [1, 0], sizes = [1, 128], strides = [1, 1]} : vector<6x128xf32> to vector<1x128xf32>
    %17 = vector.broadcast %7 : vector<8x1xf32> to vector<8x128xf32>
    %18 = vector.broadcast %16 : vector<1x128xf32> to vector<8x128xf32>
    %19 = arith.mulf %17, %18 : vector<8x128xf32>
    %20 = arith.addf %15, %19 : vector<8x128xf32>
    %21 = vector.extract_strided_slice %1 {offsets = [2, 0], sizes = [1, 128], strides = [1, 1]} : vector<6x128xf32> to vector<1x128xf32>
    %22 = vector.broadcast %8 : vector<8x1xf32> to vector<8x128xf32>
    %23 = vector.broadcast %21 : vector<1x128xf32> to vector<8x128xf32>
    %24 = arith.mulf %22, %23 : vector<8x128xf32>
    %25 = arith.addf %20, %24 : vector<8x128xf32>
    %26 = vector.extract_strided_slice %1 {offsets = [3, 0], sizes = [1, 128], strides = [1, 1]} : vector<6x128xf32> to vector<1x128xf32>
    %27 = vector.broadcast %9 : vector<8x1xf32> to vector<8x128xf32>
    %28 = vector.broadcast %26 : vector<1x128xf32> to vector<8x128xf32>
    %29 = arith.mulf %27, %28 : vector<8x128xf32>
    %30 = arith.addf %25, %29 : vector<8x128xf32>
    %31 = vector.extract_strided_slice %1 {offsets = [4, 0], sizes = [1, 128], strides = [1, 1]} : vector<6x128xf32> to vector<1x128xf32>
    %32 = vector.broadcast %10 : vector<8x1xf32> to vector<8x128xf32>
    %33 = vector.broadcast %31 : vector<1x128xf32> to vector<8x128xf32>
    %34 = arith.mulf %32, %33 : vector<8x128xf32>
    %35 = arith.addf %30, %34 : vector<8x128xf32>
    %36 = vector.extract_strided_slice %1 {offsets = [5, 0], sizes = [1, 128], strides = [1, 1]} : vector<6x128xf32> to vector<1x128xf32>
    %37 = vector.broadcast %11 : vector<8x1xf32> to vector<8x128xf32>
    %38 = vector.broadcast %36 : vector<1x128xf32> to vector<8x128xf32>
    %39 = arith.mulf %37, %38 : vector<8x128xf32>
    %40 = arith.addf %35, %39 : vector<8x128xf32>
    %41 = math.tanh %40 : vector<8x128xf32>
    %cst = arith.constant dense<0.000000e+00> : vector<8x128xf32>
    %42 = tpu.matmul %41, %2, %cst {dimension_numbers = #tpu.dot_dimension_numbers<[1], [0], [0], [1], [0, 0, 1, 1], [], []>} : vector<8x128xf32>, vector<128x128xf32>, vector<8x128xf32> -> vector<8x128xf32>
    %43 = math.tanh %42 : vector<8x128xf32>
    %44 = vector.extract_strided_slice %3 {offsets = [0, 0], sizes = [1, 128], strides = [1, 1]} : vector<8x128xf32> to vector<1x128xf32>
    %45 = vector.broadcast %44 : vector<1x128xf32> to vector<8x128xf32>
    %46 = arith.mulf %43, %45 : vector<8x128xf32>
    %cst_7 = arith.constant dense<0.000000e+00> : vector<8xf32>
    %47 = vector.multi_reduction <add>, %46, %cst_7 [1] : vector<8x128xf32> to vector<8xf32>
    %48 = vector.shape_cast %47 : vector<8xf32> to vector<8x1xf32>
    %49 = vector.extract_strided_slice %3 {offsets = [1, 0], sizes = [1, 128], strides = [1, 1]} : vector<8x128xf32> to vector<1x128xf32>
    %50 = vector.broadcast %49 : vector<1x128xf32> to vector<8x128xf32>
    %51 = arith.mulf %43, %50 : vector<8x128xf32>
    %cst_8 = arith.constant dense<0.000000e+00> : vector<8xf32>
    %52 = vector.multi_reduction <add>, %51, %cst_8 [1] : vector<8x128xf32> to vector<8xf32>
    %53 = vector.shape_cast %52 : vector<8xf32> to vector<8x1xf32>
    %54 = vector.extract_strided_slice %3 {offsets = [2, 0], sizes = [1, 128], strides = [1, 1]} : vector<8x128xf32> to vector<1x128xf32>
    %55 = vector.broadcast %54 : vector<1x128xf32> to vector<8x128xf32>
    %56 = arith.mulf %43, %55 : vector<8x128xf32>
    %cst_9 = arith.constant dense<0.000000e+00> : vector<8xf32>
    %57 = vector.multi_reduction <add>, %56, %cst_9 [1] : vector<8x128xf32> to vector<8xf32>
    %58 = vector.shape_cast %57 : vector<8xf32> to vector<8x1xf32>
    %59 = arith.mulf %48, %48 : vector<8x1xf32>
    %60 = arith.mulf %53, %53 : vector<8x1xf32>
    %61 = arith.addf %59, %60 : vector<8x1xf32>
    %cst_10 = arith.constant 5.000000e-01 : f32
    %62 = vector.broadcast %cst_10 : f32 to vector<8x1xf32>
    %63 = arith.mulf %62, %61 : vector<8x1xf32>
    %64 = arith.addf %48, %53 : vector<8x1xf32>
    %65 = arith.mulf %5, %64 : vector<8x1xf32>
    %66 = arith.addf %63, %65 : vector<8x1xf32>
    %cst_11 = arith.constant 0.000000e+00 : f32
    %67 = vector.broadcast %cst_11 : f32 to vector<8x6xf32>
    %68 = tpu.concatenate %66, %58, %67 in 1 : vector<8x1xf32>, vector<8x1xf32>, vector<8x6xf32> -> vector<8x8xf32>
    %c0_12 = arith.constant 0 : index
    %c0_13 = arith.constant 0 : index
    %69 = vector.load %arg5[%c0_12, %c0_13] : memref<8x8xf32, #tpu.memory_space<vmem>>, vector<8x8xf32>
    tpu.vector_store %arg5[%c0_12, %c0_13], %68 {strides = array<i32>} : memref<8x8xf32, #tpu.memory_space<vmem>>, vector<8x8xf32>,
    return
  }
  func.func @transform_0(%arg0: i32) -> (i32, i32) {
    %c0_i32 = arith.constant 0 : i32
    %c0_i32_0 = arith.constant 0 : i32
    return %arg0, %c0_i32 : i32, i32
  }
  func.func @transform_1(%arg0: i32) -> (i32, i32) {
    %c0_i32 = arith.constant 0 : i32
    %c0_i32_0 = arith.constant 0 : i32
    %c0_i32_1 = arith.constant 0 : i32
    return %c0_i32, %c0_i32_0 : i32, i32
  }
  func.func @transform_2(%arg0: i32) -> (i32, i32) {
    %c0_i32 = arith.constant 0 : i32
    %c0_i32_0 = arith.constant 0 : i32
    %c0_i32_1 = arith.constant 0 : i32
    return %c0_i32, %c0_i32_0 : i32, i32
  }
  func.func @transform_3(%arg0: i32) -> (i32, i32) {
    %c0_i32 = arith.constant 0 : i32
    %c0_i32_0 = arith.constant 0 : i32
    %c0_i32_1 = arith.constant 0 : i32
    return %c0_i32, %c0_i32_0 : i32, i32
  }
  func.func @transform_4(%arg0: i32) -> (i32, i32) {
    %c0_i32 = arith.constant 0 : i32
    %c0_i32_0 = arith.constant 0 : i32
    return %arg0, %c0_i32 : i32, i32
  }
}

</mosaic_0001>

<llo_original>
// kernel: tpu_custom_call.1
$region0: #{tpu_custom_call.1}
  #allocation0 [shape = 'u32[]', space=smem, size = 0x4, offset = 0x4, fixed_abs, tag = 'smem constant byte address 0x4 - core index']
  #allocation1 [shape = 'u32[144,128]{1,0:T(1,128)}', space=vmem, size = 0x12000, scoped, tag = 'internal scratch']
  %s0 = inlined_call_operand.hbm [shape: f32[8,8], index: 0, kind: input, shape index: {}]
  %s1 = inlined_call_operand.hbm [shape: f32[6,128], index: 1, kind: input, shape index: {}]
  %s2 = inlined_call_operand.hbm [shape: f32[128,128], index: 2, kind: input, shape index: {}]
  %s3 = inlined_call_operand.vmem [shape: f32[8,128], index: 3, kind: input, shape index: {}]
  %s4 = inlined_call_operand.hbm [shape: f32[8,8], index: 4, kind: output, shape index: {}]
  %s5 = sld [smem:[#allocation0]]
  $region38: #{tpu_custom_call.1} parent=0
    _
  %s7 = ssub.s32 1, %s5
  %s8 = scalar_select 0, %s7, %s5
  $region1: #{tpu_custom_call.1} parent=0
    #allocation2 [shape = 'u8[4096]{0}', space=vmem, size = 0x1000, scoped, tag = 'input window, operand 0, single buffered']
    #allocation3 [shape = 's32[1]{0}', space=sflag, size = 0x4, scoped, tag = 'scoped memory for tpu_custom_call.1']
    #allocation4 [shape = 's32[1]{0}', space=sflag, size = 0x4, scoped, tag = 'scoped memory for tpu_custom_call.1']
    #allocation5 [shape = 'u8[4096]{0}', space=vmem, size = 0x1000, scoped, tag = 'input window, operand 1, single buffered']
    #allocation6 [shape = 's32[1]{0}', space=sflag, size = 0x4, scoped, tag = 'scoped memory for tpu_custom_call.1']
    #allocation7 [shape = 'u8[65536]{0}', space=vmem, size = 0x10000, scoped, tag = 'input window, operand 2, single buffered']
    #allocation8 [shape = 'u8[4096]{0}', space=vmem, size = 0x1000, scoped, tag = 'output window, operand 0, single buffered']
    %9 = vsyncpa [#allocation3], 0
    %10 = vsyncpa [#allocation6], 0
    %11 = vsyncpa [#allocation4], 0
    // Predicated region
    $region2: #{tpu_custom_call.1} parent=1 // pred_check
      _
    $region3: #{tpu_custom_call.1} parent=1 // pred_check_branch
      %13 = sbr.rel (0) target = $region5
    $region4: #{tpu_custom_call.1} parent=1 // pred_region
      %s15 = ssub.s32 128, 128
      %16 = vsyncadd [#allocation3], %s15
      %s18 = sshll.u32 [#allocation2], 4
      %s19 = int_to_ptr.vmem [resolvable:$true] %s18
      %21 = dma.hbm_to_vmem [thread:$0]  %s0, 128, %s19, [#allocation3]
    $region5: #{tpu_custom_call.1} parent=1 // pred_fallthru
      _
    // Predicated region
    $region6: #{tpu_custom_call.1} parent=1 // pred_check
      _
    $region7: #{tpu_custom_call.1} parent=1 // pred_check_branch
      %23 = sbr.rel (0) target = $region9
    $region8: #{tpu_custom_call.1} parent=1 // pred_region
      %s25 = ssub.s32 128, 128
      %26 = vsyncadd [#allocation6], %s25
      %s28 = sshll.u32 [#allocation5], 4
      %s29 = int_to_ptr.vmem [resolvable:$true] %s28
      %31 = dma.hbm_to_vmem [thread:$0]  %s1, 128, %s29, [#allocation6]
    $region9: #{tpu_custom_call.1} parent=1 // pred_fallthru
      _
    // Predicated region
    $region10: #{tpu_custom_call.1} parent=1 // pred_check
      _
    $region11: #{tpu_custom_call.1} parent=1 // pred_check_branch
      %33 = sbr.rel (0) target = $region13
    $region12: #{tpu_custom_call.1} parent=1 // pred_region
      %s35 = ssub.s32 2048, 2048
      %36 = vsyncadd [#allocation6], %s35
      %s37 = sshll.u32 [#allocation7], 4
      %s38 = int_to_ptr.vmem [resolvable:$true] %s37
      %43 = dma.hbm_to_vmem [thread:$0]  %s2, 2048, %s38, [#allocation6], 128, 128, 8
    $region13: #{tpu_custom_call.1} parent=1 // pred_fallthru
      _
    // Predicated region
    $region14: #{tpu_custom_call.1} parent=1 // pred_check
      _
    $region15: #{tpu_custom_call.1} parent=1 // pred_check_branch
      %45 = sbr.rel (0) target = $region17
    $region16: #{tpu_custom_call.1} parent=1 // pred_region
      _
    $region17: #{tpu_custom_call.1} parent=1 // pred_fallthru
      _
    // Predicated region
    $region18: #{tpu_custom_call.1} parent=1 // pred_check
      _
    $region19: #{tpu_custom_call.1} parent=1 // pred_check_branch
      %47 = sbr.rel (0) target = $region21
    $region20: #{tpu_custom_call.1} parent=1 // pred_region
      %48 = dma.done [#allocation3], 128
    $region21: #{tpu_custom_call.1} parent=1 // pred_fallthru
      _
    // Predicated region
    $region22: #{tpu_custom_call.1} parent=1 // pred_check
      _
    $region23: #{tpu_custom_call.1} parent=1 // pred_check_branch
      %50 = sbr.rel (0) target = $region25
    $region24: #{tpu_custom_call.1} parent=1 // pred_region
      %51 = dma.done [#allocation6], 128
    $region25: #{tpu_custom_call.1} parent=1 // pred_fallthru
      _
    // Predicated region
    $region26: #{tpu_custom_call.1} parent=1 // pred_check
      _
    $region27: #{tpu_custom_call.1} parent=1 // pred_check_branch
      %53 = sbr.rel (0) target = $region29
    $region28: #{tpu_custom_call.1} parent=1 // pred_region
      %54 = dma.done [#allocation6], 2048
    $region29: #{tpu_custom_call.1} parent=1 // pred_fallthru
      _
    %v55 = vld [vmem:[#allocation2] sm:$0xff]
    %v56 = vld [vmem:[#allocation5] sm:$0x3f]
    %v57 = vld [vmem:[#allocation7] sm:$0xff]
    %v58 = vld [vmem:[#allocation7 + $0x8] sm:$0xff]
    %v59 = vld [vmem:[#allocation7 + $0x10] sm:$0xff]
    %v60 = vld [vmem:[#allocation7 + $0x18] sm:$0xff]
    %v61 = vld [vmem:[#allocation7 + $0x20] sm:$0xff]
    %v62 = vld [vmem:[#allocation7 + $0x28] sm:$0xff]
    %v63 = vld [vmem:[#allocation7 + $0x30] sm:$0xff]
    %v64 = vld [vmem:[#allocation7 + $0x38] sm:$0xff]
    %v65 = vld [vmem:[#allocation7 + $0x40] sm:$0xff]
    %v66 = vld [vmem:[#allocation7 + $0x48] sm:$0xff]
    %v67 = vld [vmem:[#allocation7 + $0x50] sm:$0xff]
    %v68 = vld [vmem:[#allocation7 + $0x58] sm:$0xff]
    %v69 = vld [vmem:[#allocation7 + $0x60] sm:$0xff]
    %v70 = vld [vmem:[#allocation7 + $0x68] sm:$0xff]
    %v71 = vld [vmem:[#allocation7 + $0x70] sm:$0xff]
    %v72 = vld [vmem:[#allocation7 + $0x78] sm:$0xff]
    %v73 = vld [vmem:[%s3] sm:$0xff]
    %v74 = vrsqrt.pop %v55
    %v75 = vmul.f32 %v55, %v74
    %vm76 = vcmp.eq.f32.partialorder %v55, inf
    %v77 = vsel %vm76, %v55, %v75
    %vm78 = vcmp.eq.f32.partialorder %v55, 0.0
    %v79 = vand.u32 %v55, 2147483648
    %v80 = vsel %vm78, %v79, %v77
    %v81 = vand.u32 2147483647, %v55
    %vm82 = vcmp.le.f32.partialorder %v81, 0.7853982
    %vm83 = vcmp.lt.s32.totalorder %v55, 0
    %v84 = vand.u32 %v55, 2139095040
    %v85 = vshrl.u32 %v84, 23
    %v86 = vsub.s32 %v85, 127
    %v87 = vand.u32 2147483647, %v55
    %v88 = vand.u32 %v87, 8388607
    %v89 = vor.u32 %v88, 8388608
    %v90 = vsub.s32 0, %v89
    %v91 = vadd.s32 %v86, 1
    %vm92 = vcmp.gt.s32.totalorder %v91, 0
    %v93 = vsel %vm92, %v91, 0
    %v94 = vshrl.u32 %v93, 5
    %v95 = vand.u32 %v93, 31
    %v96 = vsub.s32 32, %v95
    %v97 = vshrl.u32 683565275, %v96
    %v98 = vshll.u32 683565275, %v95
    %v99 = vshrl.u32 2475754826, %v96
    %v100 = vor.u32 %v98, %v99
    %v101 = vshll.u32 2475754826, %v95
    %v102 = vshrl.u32 2131351028, %v96
    %v103 = vor.u32 %v101, %v102
    %v104 = vshll.u32 2131351028, %v95
    %v105 = vshrl.u32 2102212464, %v96
    %v106 = vor.u32 %v104, %v105
    %v107 = vshll.u32 2102212464, %v95
    %v108 = vshrl.u32 920167782, %v96
    %v109 = vor.u32 %v107, %v108
    %v110 = vshll.u32 920167782, %v95
    %v111 = vshrl.u32 1326507024, %v96
    %v112 = vor.u32 %v110, %v111
    %vm113 = vcmp.lt.s32.totalorder %v94, 1
    %vm114 = vcmp.lt.s32.totalorder %v94, 2
    %vm115 = vcmp.lt.s32.totalorder %v94, 3
    %vm116 = vcmp.lt.s32.totalorder %v94, 4
    %v117 = vsel %vm113, %v97, %v100
    %v118 = vsel %vm116, %v106, 2102212464
    %v119 = vsel %vm115, %v103, %v118
    %v120 = vsel %vm114, %v117, %v119
    %v121 = vsel %vm113, %v100, %v103
    %v122 = vsel %vm116, %v109, 920167782
    %v123 = vsel %vm115, %v106, %v122
    %v124 = vsel %vm114, %v121, %v123
    %v125 = vsel %vm113, %v103, %v106
    %v126 = vsel %vm116, %v112, 1326507024
    %v127 = vsel %vm115, %v109, %v126
    %v128 = vsel %vm114, %v125, %v127
    %v129 = vshll.u32 %v89, 8
    %v130 = vmul.u32.u64.compose %v129, %v128
    %v131 = vextract.low.u32 %v130
    %v132 = vextract.high.u32 %v130
    %v133 = vmul.u32.u64.compose %v129, %v124
    %v134 = vextract.low.u32 %v133
    %v135 = vextract.high.u32 %v133
    %v136 = vmul.u32 %v129, %v120
    %v137 = vadd.s32 %v132, %v134
    %vm138 = vc.u32 %v132, %v134
    %v139 = vadd.s32 %v135, 1
    %v140 = vsel %vm138, %v139, %v135
    %v141 = vadd.s32 %v136, %v140
    %v142 = vadd.s32 %v141, 536870912
    %v143 = vshrl.u32 %v142, 30
    %v144 = vshll.u32 %v143, 30
    %v145 = vsub.s32 %v141, %v144
    %vm146 = vcmp.lt.s32.totalorder %v145, 0
    %v147 = vsub.s32 0, %v145
    %v148 = vsel %vm146, %v147, %v145
    %v149 = vclz %v148
    %v150 = vsub.s32 %v149, 2
    %vm151 = vcmp.gt.s32.totalorder 0, %v150
    %v152 = vsel %vm151, 0, %v150
    %v153 = vsub.s32 32, %v152
    %v154 = vshll.u32 %v145, %v152
    %v155 = vshrl.u32 %v137, %v153
    %v156 = vor.u32 %v154, %v155
    %v157 = vsub.s32 4294967266, %v152
    %v158 = vadd.s32 %v157, 127
    %v159 = vshll.u32 %v158, 23
    %v160 = vor.u32 4788187, %v159
    %v161 = vand.u32 2147483647, %v160
    %v163 = vcvt.s32.f32 %v156
    %v164 = vmul.f32 %v163, %v161
    %v165 = vxor.u32 %v164, 2147483648
    %v166 = vsel %vm83, %v165, %v164
    %v167 = vsub.s32 4, %v143
    %v168 = vsel %vm83, %v167, %v143
    %v169 = vsel %vm82, %v55, %v166
    %v170 = vsel %vm82, 0, %v168
    %v171 = vcosq.f32.pop %v169
    %v172 = vsinq.f32.pop %v169
    %vm173 = vweird.f32 %v55
    %v174 = vand.u32 %v170, 3
    %vm175 = vcmp.lt.s32.totalorder %v174, 2
    %vm176 = vcmp.eq.s32.totalorder %v174, 0
    %v177 = vxor.u32 %v172, 2147483648
    %v178 = vsel %vm176, %v171, %v177
    %vm179 = vcmp.eq.s32.totalorder %v174, 2
    %v180 = vxor.u32 %v171, 2147483648
    %v181 = vsel %vm179, %v180, %v172
    %v182 = vsel %vm175, %v178, %v181
    %v183 = vsel %vm173, nan, %v182
    %v184 = vand.u32 2147483647, %v55
    %vm185 = vcmp.le.f32.partialorder %v184, 0.7853982
    %vm186 = vcmp.lt.s32.totalorder %v55, 0
    %v187 = vand.u32 %v55, 2139095040
    %v188 = vshrl.u32 %v187, 23
    %v189 = vsub.s32 %v188, 127
    %v190 = vand.u32 2147483647, %v55
    %v191 = vand.u32 %v190, 8388607
    %v192 = vor.u32 %v191, 8388608
    %v193 = vsub.s32 0, %v192
    %v194 = vadd.s32 %v189, 1
    %vm195 = vcmp.gt.s32.totalorder %v194, 0
    %v196 = vsel %vm195, %v194, 0
    %v197 = vshrl.u32 %v196, 5
    %v198 = vand.u32 %v196, 31
    %v199 = vsub.s32 32, %v198
    %v200 = vshrl.u32 683565275, %v199
    %v201 = vshll.u32 683565275, %v198
    %v202 = vshrl.u32 2475754826, %v199
    %v203 = vor.u32 %v201, %v202
    %v204 = vshll.u32 2475754826, %v198
    %v205 = vshrl.u32 2131351028, %v199
    %v206 = vor.u32 %v204, %v205
    %v207 = vshll.u32 2131351028, %v198
    %v208 = vshrl.u32 2102212464, %v199
    %v209 = vor.u32 %v207, %v208
    %v210 = vshll.u32 2102212464, %v198
    %v211 = vshrl.u32 920167782, %v199
    %v212 = vor.u32 %v210, %v211
    %v213 = vshll.u32 920167782, %v198
    %v214 = vshrl.u32 1326507024, %v199
    %v215 = vor.u32 %v213, %v214
    %vm216 = vcmp.lt.s32.totalorder %v197, 1
    %vm217 = vcmp.lt.s32.totalorder %v197, 2
    %vm218 = vcmp.lt.s32.totalorder %v197, 3
    %vm219 = vcmp.lt.s32.totalorder %v197, 4
    %v220 = vsel %vm216, %v200, %v203
    %v221 = vsel %vm219, %v209, 2102212464
    %v222 = vsel %vm218, %v206, %v221
    %v223 = vsel %vm217, %v220, %v222
    %v224 = vsel %vm216, %v203, %v206
    %v225 = vsel %vm219, %v212, 920167782
    %v226 = vsel %vm218, %v209, %v225
    %v227 = vsel %vm217, %v224, %v226
    %v228 = vsel %vm216, %v206, %v209
    %v229 = vsel %vm219, %v215, 1326507024
    %v230 = vsel %vm218, %v212, %v229
    %v231 = vsel %vm217, %v228, %v230
    %v232 = vshll.u32 %v192, 8
    %v233 = vmul.u32.u64.compose %v232, %v231
    %v234 = vextract.low.u32 %v233
    %v235 = vextract.high.u32 %v233
    %v236 = vmul.u32.u64.compose %v232, %v227
    %v237 = vextract.low.u32 %v236
    %v238 = vextract.high.u32 %v236
    %v239 = vmul.u32 %v232, %v223
    %v240 = vadd.s32 %v235, %v237
    %vm241 = vc.u32 %v235, %v237
    %v242 = vadd.s32 %v238, 1
    %v243 = vsel %vm241, %v242, %v238
    %v244 = vadd.s32 %v239, %v243
    %v245 = vadd.s32 %v244, 536870912
    %v246 = vshrl.u32 %v245, 30
    %v247 = vshll.u32 %v246, 30
    %v248 = vsub.s32 %v244, %v247
    %vm249 = vcmp.lt.s32.totalorder %v248, 0
    %v250 = vsub.s32 0, %v248
    %v251 = vsel %vm249, %v250, %v248
    %v252 = vclz %v251
    %v253 = vsub.s32 %v252, 2
    %vm254 = vcmp.gt.s32.totalorder 0, %v253
    %v255 = vsel %vm254, 0, %v253
    %v256 = vsub.s32 32, %v255
    %v257 = vshll.u32 %v248, %v255
    %v258 = vshrl.u32 %v240, %v256
    %v259 = vor.u32 %v257, %v258
    %v260 = vsub.s32 4294967266, %v255
    %v261 = vadd.s32 %v260, 127
    %v262 = vshll.u32 %v261, 23
    %v263 = vor.u32 4788187, %v262
    %v264 = vand.u32 2147483647, %v263
    %v266 = vcvt.s32.f32 %v259
    %v267 = vmul.f32 %v266, %v264
    %v268 = vxor.u32 %v267, 2147483648
    %v269 = vsel %vm186, %v268, %v267
    %v270 = vsub.s32 4, %v246
    %v271 = vsel %vm186, %v270, %v246
    %v272 = vsel %vm185, %v55, %v269
    %v273 = vsel %vm185, 0, %v271
    %v274 = vcosq.f32.pop %v272
    %v275 = vsinq.f32.pop %v272
    %vm276 = vweird.f32 %v55
    %v277 = vadd.s32 %v273, 3
    %v278 = vand.u32 %v277, 3
    %vm279 = vcmp.lt.s32.totalorder %v278, 2
    %vm280 = vcmp.eq.s32.totalorder %v278, 0
    %v281 = vxor.u32 %v275, 2147483648
    %v282 = vsel %vm280, %v274, %v281
    %vm283 = vcmp.eq.s32.totalorder %v278, 2
    %v284 = vxor.u32 %v274, 2147483648
    %v285 = vsel %vm283, %v284, %v275
    %v286 = vsel %vm279, %v282, %v285
    %v287 = vsel %vm276, nan, %v286
    %289 = vset.pattern.permute.xlu0 0
    %290 = vperm.xlu0 %289, %v80
    %v291 = vpop.permute.xlu0 %290
    %v293 = vlaneseq
    %v294 = vshrl.u32 %v293, 7
    %v295 = vsub.s32 0, %v294
    %v296 = vrot.slane %v56, %v295
    %v297 = vmul.f32 %v291, %v296
    %299 = vset.pattern.permute.xlu0 1
    %300 = vperm.xlu0 %299, %v183
    %v301 = vpop.permute.xlu0 %300
    %v303 = vlaneseq
    %v304 = vshrl.u32 %v303, 7
    %v305 = vsub.s32 1, %v304
    %v306 = vrot.slane %v56, %v305
    %v307 = vmul.f32 %v301, %v306
    %v308 = vadd.f32 %v297, %v307
    %310 = vset.pattern.permute.xlu0 1
    %311 = vperm.xlu0 %310, %v287
    %v312 = vpop.permute.xlu0 %311
    %v314 = vlaneseq
    %v315 = vshrl.u32 %v314, 7
    %v316 = vsub.s32 2, %v315
    %v317 = vrot.slane %v56, %v316
    %v318 = vmul.f32 %v312, %v317
    %v319 = vadd.f32 %v308, %v318
    %321 = vset.pattern.permute.xlu0 2
    %322 = vperm.xlu0 %321, %v55
    %v323 = vpop.permute.xlu0 %322
    %v325 = vlaneseq
    %v326 = vshrl.u32 %v325, 7
    %v327 = vsub.s32 3, %v326
    %v328 = vrot.slane %v56, %v327
    %v329 = vmul.f32 %v323, %v328
    %v330 = vadd.f32 %v319, %v329
    %331 = vset.pattern.permute.xlu0 3
    %332 = vperm.xlu0 %331, %v55
    %v333 = vpop.permute.xlu0 %332
    %v335 = vlaneseq
    %v336 = vshrl.u32 %v335, 7
    %v337 = vsub.s32 4, %v336
    %v338 = vrot.slane %v56, %v337
    %v339 = vmul.f32 %v333, %v338
    %v340 = vadd.f32 %v330, %v339
    %341 = vset.pattern.permute.xlu0 4
    %342 = vperm.xlu0 %341, %v55
    %v343 = vpop.permute.xlu0 %342
    %v345 = vlaneseq
    %v346 = vshrl.u32 %v345, 7
    %v347 = vsub.s32 5, %v346
    %v348 = vrot.slane %v56, %v347
    %v349 = vmul.f32 %v343, %v348
    %v350 = vadd.f32 %v340, %v349
    %v351 = vtanh.pop %v350
    %352 = vmatprep.subr.mxu0 0.0
    %353 = vmatpush1.msra.mxu0 %v57
    %354 = vmatprep.subr.mxu0 0.0
    %355 = vmatpush1.msra.mxu0 %v58
    %356 = vmatprep.subr.mxu0 0.0
    %357 = vmatpush1.msra.mxu0 %v59
    %358 = vmatprep.subr.mxu0 0.0
    %359 = vmatpush1.msra.mxu0 %v60
    %360 = vmatprep.subr.mxu0 0.0
    %361 = vmatpush1.msra.mxu0 %v61
    %362 = vmatprep.subr.mxu0 0.0
    %363 = vmatpush1.msra.mxu0 %v62
    %364 = vmatprep.subr.mxu0 0.0
    %365 = vmatpush1.msra.mxu0 %v63
    %366 = vmatprep.subr.mxu0 0.0
    %367 = vmatpush1.msra.mxu0 %v64
    %368 = vmatprep.subr.mxu0 0.0
    %369 = vmatpush1.msra.mxu0 %v65
    %370 = vmatprep.subr.mxu0 0.0
    %371 = vmatpush1.msra.mxu0 %v66
    %372 = vmatprep.subr.mxu0 0.0
    %373 = vmatpush1.msra.mxu0 %v67
    %374 = vmatprep.subr.mxu0 0.0
    %375 = vmatpush1.msra.mxu0 %v68
    %376 = vmatprep.subr.mxu0 0.0
    %377 = vmatpush1.msra.mxu0 %v69
    %378 = vmatprep.subr.mxu0 0.0
    %379 = vmatpush1.msra.mxu0 %v70
    %380 = vmatprep.subr.mxu0 0.0
    %381 = vmatpush1.msra.mxu0 %v71
    %382 = vmatprep.subr.mxu0 0.0
    %383 = vmatpush1.msra.mxu0 %v72
    %384 = vmatprep.subr.mxu0 0.0
    %385 = vmatpush1.msra.mxu0 0.0
    %386 = vmatprep.subr.mxu0 0.0
    %387 = vmatpush1.msra.mxu0 0.0
    %388 = vmatprep.subr.mxu0 0.0
    %389 = vmatpush1.msra.mxu0 0.0
    %390 = vmatprep.subr.mxu0 0.0
    %391 = vmatpush1.msra.mxu0 0.0
    %392 = vmatprep.subr.mxu0 0.0
    %393 = vmatpush1.msra.mxu0 0.0
    %394 = vmatprep.subr.mxu0 0.0
    %395 = vmatpush1.msra.mxu0 0.0
    %396 = vmatprep.subr.mxu0 0.0
    %397 = vmatpush1.msra.mxu0 0.0
    %398 = vmatprep.subr.mxu0 0.0
    %399 = vmatpush1.msra.mxu0 0.0
    %400 = vmatprep.subr.mxu0 0.0
    %401 = vmatpush1.msra.mxu0 0.0
    %402 = vmatprep.subr.mxu0 0.0
    %403 = vmatpush1.msra.mxu0 0.0
    %404 = vmatprep.subr.mxu0 0.0
    %405 = vmatpush1.msra.mxu0 0.0
    %406 = vmatprep.subr.mxu0 0.0
    %407 = vmatpush1.msra.mxu0 0.0
    %408 = vmatprep.subr.mxu0 0.0
    %409 = vmatpush1.msra.mxu0 0.0
    %410 = vmatprep.subr.mxu0 0.0
    %411 = vmatpush1.msra.mxu0 0.0
    %412 = vmatprep.subr.mxu0 0.0
    %413 = vmatpush1.msra.mxu0 0.0
    %414 = vmatprep.subr.mxu0 0.0
    %415 = vmatpush1.msra.mxu0 0.0
    %416 = vmatprep.mubr.f32.mxu0 0.0
    %417 = vmatmul.mubr.f32.gmra.mrb[0].mxu0 %v351
    %v418 = vpop.f32.mrb[0].mxu0
    %v419 = vadd.f32 0.0, %v418
    %v420 = vpop.f32.mrb[0].mxu0
    %421 = vdwg.mxu0
    %v422 = vtanh.pop %v419
    %v423 = vlaneseq
    %v424 = vshrl.u32 %v423, 7
    %v425 = vsub.s32 0, %v424
    %v426 = vrot.slane %v73, %v425
    %v427 = vmul.f32 %v422, %v426
    %428 = vadd.xlane.f32.xlu0 %v427
    %v429 = vpop.xlane.xlu0 %428
    %v430 = vlaneseq
    %v431 = vshrl.u32 %v430, 7
    %v432 = vsub.s32 1, %v431
    %v433 = vrot.slane %v73, %v432
    %v434 = vmul.f32 %v422, %v433
    %435 = vadd.xlane.f32.xlu0 %v434
    %v436 = vpop.xlane.xlu0 %435
    %v437 = vlaneseq
    %v438 = vshrl.u32 %v437, 7
    %v439 = vsub.s32 2, %v438
    %v440 = vrot.slane %v73, %v439
    %v441 = vmul.f32 %v422, %v440
    %442 = vadd.xlane.f32.xlu0 %v441
    %v443 = vpop.xlane.xlu0 %442
    %v444 = vmul.f32 %v429, %v429
    %v445 = vmul.f32 %v436, %v436
    %v446 = vadd.f32 %v444, %v445
    %v447 = vmul.f32 %v446, 0.5
    %v448 = vadd.f32 %v429, %v436
    %v449 = vmul.f32 %v80, %v448
    %v450 = vadd.f32 %v447, %v449
    %vm451 = vcmask 7168
    %v452 = vsel %vm451, %v450, %v443
    %vm453 = vcmask 15360
    %v454 = vsel %vm453, %v452, 0.0
    %vm455 = vcmask 64512
    %456 = vst.msk [vmem:[#allocation8] sm:$0xff] %vm455, %v454
    // Predicated region
    $region30: #{tpu_custom_call.1} parent=1 // pred_check
      _
    $region31: #{tpu_custom_call.1} parent=1 // pred_check_branch
      %458 = sbr.rel (0) target = $region33
    $region32: #{tpu_custom_call.1} parent=1 // pred_region
      %s460 = ssub.s32 128, 128
      %461 = vsyncadd [#allocation4], %s460
      %s463 = sshll.u32 [#allocation8], 4
      %s464 = int_to_ptr.vmem [resolvable:$true] %s463
      %466 = dma.vmem_to_hbm [thread:$0]  %s464, 128, %s4, [#allocation4]
    $region33: #{tpu_custom_call.1} parent=1 // pred_fallthru
      _
    // Predicated region
    $region34: #{tpu_custom_call.1} parent=1 // pred_check
      _
    $region35: #{tpu_custom_call.1} parent=1 // pred_check_branch
      %468 = sbr.rel (0) target = $region37
    $region36: #{tpu_custom_call.1} parent=1 // pred_region
      %469 = dma.done [#allocation4], 128
    $region37: #{tpu_custom_call.1} parent=1 // pred_fallthru
      _
    %470 = vsyncpa [#allocation3], 1
    %471 = vsyncpa [#allocation6], 1
    %472 = vsyncpa [#allocation4], 1

</llo_original>
